<compile_context>
chip_gen: v5e
topology: v5e:2x2
jax: 0.10.0
libtpu: 0.0.40
codegen_flags: <defaults>
</compile_context>

<pallas_src>
import jax
import jax.numpy as jnp
from jax.experimental import pallas as pl
from jax.experimental.pallas import tpu as pltpu

LANE = 128


def _round_up(n, m):
    return ((n + m - 1) // m) * m


def binmodel_kernel(x_ref, w1_ref, b1_ref, w2_ref, b2_ref, w3_ref, scal_ref, o_ref):
    """One batch tile of TB rows."""
    x = x_ref[...]                                                   # (TB, D) bf16

    # fc1 + ReLU  (bf16 x bf16 -> f32 on MXU; bias/activation in f32 on VPU)
    a1 = jnp.dot(x, w1_ref[...], preferred_element_type=jnp.float32) + b1_ref[...]
    h1 = jnp.maximum(a1, 0.0)

    # Dropout(p=0.2) in eval mode == identity.

    # fc2 + PReLU (single shared alpha, read from the SMEM scalar path)
    a2 = jnp.dot(h1.astype(jnp.bfloat16), w2_ref[...],
                 preferred_element_type=jnp.float32) + b2_ref[...]
    alpha = scal_ref[0]
    h2 = jnp.where(a2 > 0.0, a2, alpha * a2)

    # out + Sigmoid, computed as (1,128) @ (128,TB) so the result/store is
    # lane-dense (batch along lanes).  Zero-padded lanes contribute exactly 0.
    a3 = jnp.dot(w3_ref[...], h2.T, preferred_element_type=jnp.float32) + scal_ref[1]
    o_ref[...] = jax.nn.sigmoid(a3).reshape(o_ref.shape)             # (1, 1, TB)


def binmodel_forward(x, params, *, batch_tile=2048):
    """x: (B, input_size) f32 -> (B, 1) f32 (sigmoid probabilities)."""
    w1, b1, w2, b2, alpha, w3, b3 = params
    b, d_in = x.shape
    h1, h2 = w1.shape[1], w2.shape[1]
    h1p, h2p = _round_up(h1, LANE), _round_up(h2, LANE)

    # --- pad weights to lane width (zero pad is exact through ReLU/PReLU) ---
    w1p = jnp.zeros((d_in, h1p), jnp.bfloat16).at[:, :h1].set(w1.astype(jnp.bfloat16))
    b1p = jnp.zeros((1, h1p), jnp.float32).at[:, :h1].set(b1.reshape(1, -1))
    w2p = jnp.zeros((h1p, h2p), jnp.bfloat16).at[:h1, :h2].set(w2.astype(jnp.bfloat16))
    b2p = jnp.zeros((1, h2p), jnp.float32).at[:, :h2].set(b2.reshape(1, -1))
    w3p = jnp.zeros((1, h2p), jnp.float32).at[:, :h2].set(w3.reshape(1, -1))  # as a row
    scal = jnp.stack([alpha.reshape(()).astype(jnp.float32),
                      b3.reshape(()).astype(jnp.float32)])           # [alpha, b3] -> SMEM

    # --- batch tiling: TB rows / grid step, pad batch to a multiple of TB ---
    tb = _round_up(min(batch_tile, _round_up(b, LANE)), LANE)
    bp = _round_up(b, tb)
    g = bp // tb
    xp = jnp.zeros((bp, d_in), jnp.bfloat16).at[:b].set(x.astype(jnp.bfloat16))

    const = lambda i: (0, 0)
    out = pl.pallas_call(
        binmodel_kernel,
        out_shape=jax.ShapeDtypeStruct((g, 1, tb), jnp.float32),
        grid=(g,),
        in_specs=[
            pl.BlockSpec((tb, d_in), lambda i: (i, 0)),      # x tile (pipelined)
            pl.BlockSpec((d_in, h1p), const),                # weights: VMEM-resident
            pl.BlockSpec((1, h1p), const),
            pl.BlockSpec((h1p, h2p), const),
            pl.BlockSpec((1, h2p), const),
            pl.BlockSpec((1, h2p), const),
            pl.BlockSpec(memory_space=pltpu.MemorySpace.SMEM),  # [alpha, b3] scalars
        ],
        out_specs=pl.BlockSpec((1, 1, tb), lambda i: (i, 0, 0)),
        compiler_params=pltpu.CompilerParams(
            dimension_semantics=("parallel",),
            vmem_limit_bytes=32 * 1024 * 1024,
        ),
    )(xp, w1p, b1p, w2p, b2p, w3p, scal)

    return out.reshape(bp, 1)[:b]


def init_params(key, input_size):
    """Mimics PyTorch's default Linear init (U(-k, k), k = 1/sqrt(fan_in))."""
    def linear(k, fan_in, fan_out):
        kw, kb = jax.random.split(k)
        bound = 1.0 / jnp.sqrt(fan_in)
        w = jax.random.uniform(kw, (fan_in, fan_out), jnp.float32, -bound, bound)
        b = jax.random.uniform(kb, (1, fan_out), jnp.float32, -bound, bound)
        return w, b

    k1, k2, k3 = jax.random.split(key, 3)
    w1, b1 = linear(k1, input_size, 50)
    w2, b2 = linear(k2, 50, 100)
    w3, b3 = linear(k3, 100, 1)
    alpha = jnp.full((1, 1), 0.25, jnp.float32)   # PyTorch PReLU default
    return (w1, b1, w2, b2, alpha, w3, b3)


def reference_forward_f32(x, params):
    w1, b1, w2, b2, alpha, w3, b3 = params
    a1 = x @ w1 + b1
    h1 = jnp.maximum(a1, 0.0)
    a2 = h1 @ w2 + b2
    h2 = jnp.where(a2 > 0.0, a2, alpha.reshape(()) * a2)
    return jax.nn.sigmoid(h2 @ w3 + b3)


def reference_forward_bf16(x, params):
    """Mirrors the kernel's precision choices (bf16 operands, f32 accumulation)."""
    w1, b1, w2, b2, alpha, w3, b3 = params
    a1 = jnp.dot(x.astype(jnp.bfloat16), w1.astype(jnp.bfloat16),
                 preferred_element_type=jnp.float32) + b1
    h1 = jnp.maximum(a1, 0.0)
    a2 = jnp.dot(h1.astype(jnp.bfloat16), w2.astype(jnp.bfloat16),
                 preferred_element_type=jnp.float32) + b2
    h2 = jnp.where(a2 > 0.0, a2, alpha.reshape(()) * a2)
    return jax.nn.sigmoid(jnp.dot(h2, w3, preferred_element_type=jnp.float32) + b3)


if __name__ == "__main__":
    key = jax.random.PRNGKey(0)
    kx, kp = jax.random.split(key)

    batch, input_size = 8, 32
    x = jax.random.normal(kx, (batch, input_size), jnp.float32)
    params = init_params(kp, input_size)

    y = jax.block_until_ready(binmodel_forward(x, params))
    assert y.shape == (batch, 1)
    assert jnp.allclose(y, reference_forward_bf16(x, params), atol=1e-3, rtol=1e-3), \
        "mismatch vs bf16-matched reference"
    assert jnp.allclose(y, reference_forward_f32(x, params), atol=2e-2, rtol=2e-2), \
        "mismatch vs f32 reference"

    # Exercise the multi-step grid path (g > 1) with a small batch tile.
    x2 = jax.random.normal(jax.random.PRNGKey(1), (300, input_size), jnp.float32)
    y2 = jax.block_until_ready(binmodel_forward(x2, params, batch_tile=128))
    assert y2.shape == (300, 1)
    assert jnp.allclose(y2, reference_forward_bf16(x2, params), atol=1e-3, rtol=1e-3), \
        "mismatch vs bf16-matched reference (tiled path)"

    print("KERNEL_OK")
</pallas_src>

<mosaic_0001>
module attributes {stable_mosaic.version = 11 : i64} {
  func.func @binmodel_kernel(%arg0: i32, %arg1: memref<128x32xbf16, #tpu.memory_space<vmem>>, %arg2: memref<32x128xbf16, #tpu.memory_space<vmem>>, %arg3: memref<1x128xf32, #tpu.memory_space<vmem>>, %arg4: memref<128x128xbf16, #tpu.memory_space<vmem>>, %arg5: memref<1x128xf32, #tpu.memory_space<vmem>>, %arg6: memref<1x128xf32, #tpu.memory_space<vmem>>, %arg7: memref<2xf32, #tpu.memory_space<smem>>, %arg8: memref<1x1x128xf32, #tpu.memory_space<vmem>>) attributes {dimension_semantics = [#tpu.dimension_semantics<parallel>], iteration_bounds = array<i64: 1>, scalar_prefetch = 0 : i64, scratch_operands = 0 : i64, tpu.core_type = #tpu.core_type<tc>, window_params = [{transform_indices = @transform_0, window_bounds = array<i64: 128, 32>}, {pipeline_mode = #tpu.pipeline_mode<synchronous>, transform_indices = @transform_1, window_bounds = array<i64: 32, 128>}, {pipeline_mode = #tpu.pipeline_mode<synchronous>, transform_indices = @transform_2, window_bounds = array<i64: 1, 128>}, {pipeline_mode = #tpu.pipeline_mode<synchronous>, transform_indices = @transform_3, window_bounds = array<i64: 128, 128>}, {pipeline_mode = #tpu.pipeline_mode<synchronous>, transform_indices = @transform_4, window_bounds = array<i64: 1, 128>}, {pipeline_mode = #tpu.pipeline_mode<synchronous>, transform_indices = @transform_5, window_bounds = array<i64: 1, 128>}, {transform_indices = @transform_6, window_bounds = array<i64: 2>}, {transform_indices = @transform_7, window_bounds = array<i64: 1, 1, 128>}]} {
    %c0 = arith.constant 0 : index
    %c0_0 = arith.constant 0 : index
    %0 = vector.load %arg1[%c0, %c0_0] : memref<128x32xbf16, #tpu.memory_space<vmem>>, vector<128x32xbf16>
    %c0_1 = arith.constant 0 : index
    %c0_2 = arith.constant 0 : index
    %1 = vector.load %arg2[%c0_1, %c0_2] : memref<32x128xbf16, #tpu.memory_space<vmem>>, vector<32x128xbf16>
    %cst = arith.constant dense<0.000000e+00> : vector<128x128xf32>
    %2 = tpu.matmul %0, %1, %cst {dimension_numbers = #tpu.dot_dimension_numbers<[1], [0], [0], [1], [0, 0, 1, 1], [], []>} : vector<128x32xbf16>, vector<32x128xbf16>, vector<128x128xf32> -> vector<128x128xf32>
    %c0_3 = arith.constant 0 : index
    %c0_4 = arith.constant 0 : index
    %3 = vector.load %arg3[%c0_3, %c0_4] : memref<1x128xf32, #tpu.memory_space<vmem>>, vector<1x128xf32>
    %4 = vector.broadcast %3 : vector<1x128xf32> to vector<128x128xf32>
    %5 = arith.addf %2, %4 : vector<128x128xf32>
    %cst_5 = arith.constant 0.000000e+00 : f32
    %6 = vector.broadcast %cst_5 : f32 to vector<128x128xf32>
    %7 = arith.maximumf %5, %6 : vector<128x128xf32>
    %8 = arith.truncf %7 : vector<128x128xf32> to vector<128x128xbf16>
    %c0_6 = arith.constant 0 : index
    %c0_7 = arith.constant 0 : index
    %9 = vector.load %arg4[%c0_6, %c0_7] : memref<128x128xbf16, #tpu.memory_space<vmem>>, vector<128x128xbf16>
    %cst_8 = arith.constant dense<0.000000e+00> : vector<128x128xf32>
    %10 = tpu.matmul %8, %9, %cst_8 {dimension_numbers = #tpu.dot_dimension_numbers<[1], [0], [0], [1], [0, 0, 1, 1], [], []>} : vector<128x128xbf16>, vector<128x128xbf16>, vector<128x128xf32> -> vector<128x128xf32>
    %c0_9 = arith.constant 0 : index
    %c0_10 = arith.constant 0 : index
    %11 = vector.load %arg5[%c0_9, %c0_10] : memref<1x128xf32, #tpu.memory_space<vmem>>, vector<1x128xf32>
    %12 = vector.broadcast %11 : vector<1x128xf32> to vector<128x128xf32>
    %13 = arith.addf %10, %12 : vector<128x128xf32>
    %c0_11 = arith.constant 0 : index
    %14 = memref.load %arg7[%c0_11] : memref<2xf32, #tpu.memory_space<smem>>
    %cst_12 = arith.constant 0.000000e+00 : f32
    %15 = vector.broadcast %cst_12 : f32 to vector<128x128xf32>
    %16 = arith.cmpf ogt, %13, %15 : vector<128x128xf32>
    %17 = vector.broadcast %14 : f32 to vector<128x128xf32>
    %18 = arith.mulf %17, %13 : vector<128x128xf32>
    %19 = arith.select %16, %13, %18 : vector<128x128xi1>, vector<128x128xf32>
    %c0_13 = arith.constant 0 : index
    %c0_14 = arith.constant 0 : index
    %20 = vector.load %arg6[%c0_13, %c0_14] : memref<1x128xf32, #tpu.memory_space<vmem>>, vector<1x128xf32>
    %21 = tpu.transpose %19, [1, 0] : vector<128x128xf32> -> vector<128x128xf32>
    %cst_15 = arith.constant dense<0.000000e+00> : vector<1x128xf32>
    %22 = tpu.matmul %20, %21, %cst_15 {dimension_numbers = #tpu.dot_dimension_numbers<[1], [0], [0], [1], [0, 0, 1, 1], [], []>} : vector<1x128xf32>, vector<128x128xf32>, vector<1x128xf32> -> vector<1x128xf32>
    %c1 = arith.constant 1 : index
    %23 = memref.load %arg7[%c1] : memref<2xf32, #tpu.memory_space<smem>>
    %24 = vector.broadcast %23 : f32 to vector<1x128xf32>
    %25 = arith.addf %22, %24 : vector<1x128xf32>
    %26 = arith.negf %25 : vector<1x128xf32>
    %27 = math.exp %26 : vector<1x128xf32>
    %cst_16 = arith.constant 1.000000e+00 : f32
    %28 = vector.broadcast %cst_16 : f32 to vector<1x128xf32>
    %29 = arith.addf %28, %27 : vector<1x128xf32>
    %30 = arith.divf %28, %29 : vector<1x128xf32>
    %31 = vector.shape_cast %30 : vector<1x128xf32> to vector<1x1x128xf32>
    %c0_17 = arith.constant 0 : index
    %c0_18 = arith.constant 0 : index
    %c0_19 = arith.constant 0 : index
    %32 = vector.load %arg8[%c0_17, %c0_18, %c0_19] : memref<1x1x128xf32, #tpu.memory_space<vmem>>, vector<1x1x128xf32>
    tpu.vector_store %arg8[%c0_17, %c0_18, %c0_19], %31 {strides = array<i32>} : memref<1x1x128xf32, #tpu.memory_space<vmem>>, vector<1x1x128xf32>,
    return
  }
  func.func @transform_0(%arg0: i32) -> (i32, i32) {
    %c0_i32 = arith.constant 0 : i32
    %c0_i32_0 = arith.constant 0 : i32
    return %arg0, %c0_i32 : i32, i32
  }
  func.func @transform_1(%arg0: i32) -> (i32, i32) {
    %c0_i32 = arith.constant 0 : i32
    %c0_i32_0 = arith.constant 0 : i32
    %c0_i32_1 = arith.constant 0 : i32
    return %c0_i32, %c0_i32_0 : i32, i32
  }
  func.func @transform_2(%arg0: i32) -> (i32, i32) {
    %c0_i32 = arith.constant 0 : i32
    %c0_i32_0 = arith.constant 0 : i32
    %c0_i32_1 = arith.constant 0 : i32
    return %c0_i32, %c0_i32_0 : i32, i32
  }
  func.func @transform_3(%arg0: i32) -> (i32, i32) {
    %c0_i32 = arith.constant 0 : i32
    %c0_i32_0 = arith.constant 0 : i32
    %c0_i32_1 = arith.constant 0 : i32
    return %c0_i32, %c0_i32_0 : i32, i32
  }
  func.func @transform_4(%arg0: i32) -> (i32, i32) {
    %c0_i32 = arith.constant 0 : i32
    %c0_i32_0 = arith.constant 0 : i32
    %c0_i32_1 = arith.constant 0 : i32
    return %c0_i32, %c0_i32_0 : i32, i32
  }
  func.func @transform_5(%arg0: i32) -> (i32, i32) {
    %c0_i32 = arith.constant 0 : i32
    %c0_i32_0 = arith.constant 0 : i32
    %c0_i32_1 = arith.constant 0 : i32
    return %c0_i32, %c0_i32_0 : i32, i32
  }
  func.func @transform_6(%arg0: i32) -> i32 {
    %c0_i32 = arith.constant 0 : i32
    %c0_i32_0 = arith.constant 0 : i32
    return %c0_i32 : i32
  }
  func.func @transform_7(%arg0: i32) -> (i32, i32, i32) {
    %c0_i32 = arith.constant 0 : i32
    %c0_i32_0 = arith.constant 0 : i32
    %c0_i32_1 = arith.constant 0 : i32
    return %arg0, %c0_i32, %c0_i32_0 : i32, i32, i32
  }
}

</mosaic_0001>

<llo_original>
// kernel: tpu_custom_call.1
$region0: #{tpu_custom_call.1}
  #allocation0 [shape = 'u32[]', space=smem, size = 0x4, offset = 0x4, fixed_abs, tag = 'smem constant byte address 0x4 - core index']
  #allocation1 [shape = 'u32[72,128]{1,0:T(1,128)}', space=vmem, size = 0x9000, scoped, tag = 'internal scratch']
  %s0 = inlined_call_operand.vmem [shape: bf16[128,32], index: 0, kind: input, shape index: {}]
  %s1 = inlined_call_operand.vmem [shape: bf16[32,128], index: 1, kind: input, shape index: {}]
  %s2 = inlined_call_operand.vmem [shape: f32[1,128], index: 2, kind: input, shape index: {}]
  %s3 = inlined_call_operand.vmem [shape: bf16[128,128], index: 3, kind: input, shape index: {}]
  %s4 = inlined_call_operand.vmem [shape: f32[1,128], index: 4, kind: input, shape index: {}]
  %s5 = inlined_call_operand.vmem [shape: f32[1,128], index: 5, kind: input, shape index: {}]
  %s6 = inlined_call_operand.vmem [shape: f32[2], index: 6, kind: input, shape index: {}]
  %s7 = inlined_call_operand.hbm [shape: f32[1,1,128], index: 7, kind: output, shape index: {}]
  %s8 = sld [smem:[#allocation0]]
  $region42: #{tpu_custom_call.1} parent=0
    _
  %s10 = ssub.s32 1, %s8
  %s11 = scalar_select 0, %s10, %s8
  $region1: #{tpu_custom_call.1} parent=0
    #allocation2 [shape = 'u8[512]{0}', space=smem, size = 0x200, scoped, tag = 'input window, operand 6, single buffered']
    #allocation3 [shape = 's32[1]{0}', space=sflag, size = 0x4, scoped, tag = 'scoped memory for tpu_custom_call.1']
    #allocation4 [shape = 's32[1]{0}', space=sflag, size = 0x4, scoped, tag = 'scoped memory for tpu_custom_call.1']
    #allocation5 [shape = 'u8[512]{0}', space=vmem, size = 0x400, scoped, tag = 'output window, operand 0, single buffered']
    %12 = vsyncpa [#allocation4], 0
    %13 = vsyncpa [#allocation3], 0
    // Predicated region
    $region2: #{tpu_custom_call.1} parent=1 // pred_check
      _
    $region3: #{tpu_custom_call.1} parent=1 // pred_check_branch
      %15 = sbr.rel (0) target = $region5
    $region4: #{tpu_custom_call.1} parent=1 // pred_region
      _
    $region5: #{tpu_custom_call.1} parent=1 // pred_fallthru
      _
    // Predicated region
    $region6: #{tpu_custom_call.1} parent=1 // pred_check
      _
    $region7: #{tpu_custom_call.1} parent=1 // pred_check_branch
      %17 = sbr.rel (0) target = $region9
    $region8: #{tpu_custom_call.1} parent=1 // pred_region
      _
    $region9: #{tpu_custom_call.1} parent=1 // pred_fallthru
      _
    // Predicated region
    $region10: #{tpu_custom_call.1} parent=1 // pred_check
      _
    $region11: #{tpu_custom_call.1} parent=1 // pred_check_branch
      %19 = sbr.rel (0) target = $region13
    $region12: #{tpu_custom_call.1} parent=1 // pred_region
      _
    $region13: #{tpu_custom_call.1} parent=1 // pred_fallthru
      _
    // Predicated region
    $region14: #{tpu_custom_call.1} parent=1 // pred_check
      _
    $region15: #{tpu_custom_call.1} parent=1 // pred_check_branch
      %21 = sbr.rel (0) target = $region17
    $region16: #{tpu_custom_call.1} parent=1 // pred_region
      _
    $region17: #{tpu_custom_call.1} parent=1 // pred_fallthru
      _
    // Predicated region
    $region18: #{tpu_custom_call.1} parent=1 // pred_check
      _
    $region19: #{tpu_custom_call.1} parent=1 // pred_check_branch
      %23 = sbr.rel (0) target = $region21
    $region20: #{tpu_custom_call.1} parent=1 // pred_region
      _
    $region21: #{tpu_custom_call.1} parent=1 // pred_fallthru
      _
    // Predicated region
    $region22: #{tpu_custom_call.1} parent=1 // pred_check
      _
    $region23: #{tpu_custom_call.1} parent=1 // pred_check_branch
      %25 = sbr.rel (0) target = $region25
    $region24: #{tpu_custom_call.1} parent=1 // pred_region
      _
    $region25: #{tpu_custom_call.1} parent=1 // pred_fallthru
      _
    // Predicated region
    $region26: #{tpu_custom_call.1} parent=1 // pred_check
      _
    $region27: #{tpu_custom_call.1} parent=1 // pred_check_branch
      %27 = sbr.rel (0) target = $region29
    $region28: #{tpu_custom_call.1} parent=1 // pred_region
      %29 = vsyncadd [#allocation4], 0
      %s31 = sshll.u32 %s6, 4
      %s32 = int_to_ptr.vmem [resolvable:$true] %s31
      %34 = dma.vmem_to_smem %s32, 16, [#allocation2], [#allocation4]
    $region29: #{tpu_custom_call.1} parent=1 // pred_fallthru
      _
    // Predicated region
    $region30: #{tpu_custom_call.1} parent=1 // pred_check
      _
    $region31: #{tpu_custom_call.1} parent=1 // pred_check_branch
      %36 = sbr.rel (0) target = $region33
    $region32: #{tpu_custom_call.1} parent=1 // pred_region
      %38 = dma.done [#allocation4], 16
    $region33: #{tpu_custom_call.1} parent=1 // pred_fallthru
      _
    %39 = sfence
    %v41 = vld [vmem:[%s0] sm:$0xf]
    %v42 = vld [vmem:[%s0 + $0x4] sm:$0xf]
    %v43 = vld [vmem:[%s0 + $0x8] sm:$0xf]
    %v44 = vld [vmem:[%s0 + $0xc] sm:$0xf]
    %v45 = vld [vmem:[%s0 + $0x10] sm:$0xf]
    %v46 = vld [vmem:[%s0 + $0x14] sm:$0xf]
    %v47 = vld [vmem:[%s0 + $0x18] sm:$0xf]
    %v48 = vld [vmem:[%s0 + $0x1c] sm:$0xf]
    %v49 = vld [vmem:[%s0 + $0x20] sm:$0xf]
    %v50 = vld [vmem:[%s0 + $0x24] sm:$0xf]
    %v51 = vld [vmem:[%s0 + $0x28] sm:$0xf]
    %v52 = vld [vmem:[%s0 + $0x2c] sm:$0xf]
    %v53 = vld [vmem:[%s0 + $0x30] sm:$0xf]
    %v54 = vld [vmem:[%s0 + $0x34] sm:$0xf]
    %v55 = vld [vmem:[%s0 + $0x38] sm:$0xf]
    %v56 = vld [vmem:[%s0 + $0x3c] sm:$0xf]
    %v57 = vld [vmem:[%s1] sm:$0xf]
    %v58 = vld [vmem:[%s1 + $0x4] sm:$0xf]
    %v59 = vld [vmem:[%s1 + $0x8] sm:$0xf]
    %v60 = vld [vmem:[%s1 + $0xc] sm:$0xf]
    %v61 = vld [vmem:[%s2] sm:$0x1]
    %v63 = vperm.slane %v61, 0
    %v81 = vunpack.c.l.b16 %v41
    %v82 = vunpack.c.l.b16 %v42
    %v83 = vunpack.c.l.b16 %v43
    %v84 = vunpack.c.l.b16 %v44
    %v85 = vunpack.c.l.b16 %v45
    %v86 = vunpack.c.l.b16 %v46
    %v87 = vunpack.c.l.b16 %v47
    %v88 = vunpack.c.l.b16 %v48
    %v89 = vunpack.c.l.b16 %v49
    %v90 = vunpack.c.l.b16 %v50
    %v91 = vunpack.c.l.b16 %v51
    %v92 = vunpack.c.l.b16 %v52
    %v93 = vunpack.c.l.b16 %v53
    %v94 = vunpack.c.l.b16 %v54
    %v95 = vunpack.c.l.b16 %v55
    %v96 = vunpack.c.l.b16 %v56
    %v97 = vpack.c.b16 %v82, %v81
    %v98 = vpack.c.b16 %v84, %v83
    %v99 = vpack.c.b16 %v86, %v85
    %v100 = vpack.c.b16 %v88, %v87
    %v101 = vpack.c.b16 %v90, %v89
    %v102 = vpack.c.b16 %v92, %v91
    %v103 = vpack.c.b16 %v94, %v93
    %v104 = vpack.c.b16 %v96, %v95
    %v109 = vunpack.c.l.b16 %v57
    %v110 = vunpack.c.l.b16 %v58
    %v111 = vunpack.c.l.b16 %v59
    %v112 = vunpack.c.l.b16 %v60
    %v113 = vpack.c.b16 %v110, %v109
    %v114 = vpack.c.b16 %v112, %v111
    %vm117 = vcmask 261120
    %v119 = vsel %vm117, %v97, 0
    %v122 = vsel %vm117, %v98, 0
    %v125 = vsel %vm117, %v99, 0
    %v128 = vsel %vm117, %v100, 0
    %v131 = vsel %vm117, %v101, 0
    %v134 = vsel %vm117, %v102, 0
    %v137 = vsel %vm117, %v103, 0
    %v140 = vsel %vm117, %v104, 0
    %142 = vmatpush.bf16.msra.mxu0 0
    %143 = vmatpush.bf16.msra.mxu0 0
    %144 = vmatpush.bf16.msra.mxu0 0
    %145 = vmatpush.bf16.msra.mxu0 0
    %146 = vmatpush.bf16.msra.mxu0 0
    %147 = vmatpush.bf16.msra.mxu0 0
    %148 = vmatpush.bf16.msra.mxu0 %v114
    %149 = vmatpush.bf16.msra.mxu0 %v113
    %150 = vmatmul.bf16.gmra.mxu0 %v119
    %v151 = vpop.f32.mrf.mxu0
    %v152 = vadd.f32 %v63, %v151
    %v153 = vpop.f32.mrf.mxu0
    %v154 = vadd.f32 %v63, %v153
    %155 = vmatmul.bf16.gmra.mxu0 %v122
    %v156 = vpop.f32.mrf.mxu0
    %v157 = vadd.f32 %v63, %v156
    %v158 = vpop.f32.mrf.mxu0
    %v159 = vadd.f32 %v63, %v158
    %160 = vmatmul.bf16.gmra.mxu0 %v125
    %v161 = vpop.f32.mrf.mxu0
    %v162 = vadd.f32 %v63, %v161
    %v163 = vpop.f32.mrf.mxu0
    %v164 = vadd.f32 %v63, %v163
    %165 = vmatmul.bf16.gmra.mxu0 %v128
    %v166 = vpop.f32.mrf.mxu0
    %v167 = vadd.f32 %v63, %v166
    %v168 = vpop.f32.mrf.mxu0
    %v169 = vadd.f32 %v63, %v168
    %170 = vmatmul.bf16.gmra.mxu0 %v131
    %v171 = vpop.f32.mrf.mxu0
    %v172 = vadd.f32 %v63, %v171
    %v173 = vpop.f32.mrf.mxu0
    %v174 = vadd.f32 %v63, %v173
    %175 = vmatmul.bf16.gmra.mxu0 %v134
    %v176 = vpop.f32.mrf.mxu0
    %v177 = vadd.f32 %v63, %v176
    %v178 = vpop.f32.mrf.mxu0
    %v179 = vadd.f32 %v63, %v178
    %180 = vmatmul.bf16.gmra.mxu0 %v137
    %v181 = vpop.f32.mrf.mxu0
    %v182 = vadd.f32 %v63, %v181
    %v183 = vpop.f32.mrf.mxu0
    %v184 = vadd.f32 %v63, %v183
    %185 = vmatmul.bf16.gmra.mxu0 %v140
    %v186 = vpop.f32.mrf.mxu0
    %v187 = vadd.f32 %v63, %v186
    %v188 = vpop.f32.mrf.mxu0
    %v189 = vadd.f32 %v63, %v188
    %190 = vdwg.mxu0
    %v191 = vmax.f32 %v152, 0.0
    %v192 = vmax.f32 %v154, 0.0
    %v193 = vmax.f32 %v157, 0.0
    %v194 = vmax.f32 %v159, 0.0
    %v195 = vmax.f32 %v162, 0.0
    %v196 = vmax.f32 %v164, 0.0
    %v197 = vmax.f32 %v167, 0.0
    %v198 = vmax.f32 %v169, 0.0
    %v199 = vmax.f32 %v172, 0.0
    %v200 = vmax.f32 %v174, 0.0
    %v201 = vmax.f32 %v177, 0.0
    %v202 = vmax.f32 %v179, 0.0
    %v203 = vmax.f32 %v182, 0.0
    %v204 = vmax.f32 %v184, 0.0
    %v205 = vmax.f32 %v187, 0.0
    %v206 = vmax.f32 %v189, 0.0
    %v207 = vpack.c.bf16 %v192, %v191
    %v208 = vpack.c.bf16 %v194, %v193
    %v209 = vpack.c.bf16 %v196, %v195
    %v210 = vpack.c.bf16 %v198, %v197
    %v211 = vpack.c.bf16 %v200, %v199
    %v212 = vpack.c.bf16 %v202, %v201
    %v213 = vpack.c.bf16 %v204, %v203
    %v214 = vpack.c.bf16 %v206, %v205
    %v215 = vld [vmem:[%s3] sm:$0xf]
    %v216 = vld [vmem:[%s3 + $0x4] sm:$0xf]
    %v217 = vld [vmem:[%s3 + $0x8] sm:$0xf]
    %v218 = vld [vmem:[%s3 + $0xc] sm:$0xf]
    %v219 = vld [vmem:[%s3 + $0x10] sm:$0xf]
    %v220 = vld [vmem:[%s3 + $0x14] sm:$0xf]
    %v221 = vld [vmem:[%s3 + $0x18] sm:$0xf]
    %v222 = vld [vmem:[%s3 + $0x1c] sm:$0xf]
    %v223 = vld [vmem:[%s3 + $0x20] sm:$0xf]
    %v224 = vld [vmem:[%s3 + $0x24] sm:$0xf]
    %v225 = vld [vmem:[%s3 + $0x28] sm:$0xf]
    %v226 = vld [vmem:[%s3 + $0x2c] sm:$0xf]
    %v227 = vld [vmem:[%s3 + $0x30] sm:$0xf]
    %v228 = vld [vmem:[%s3 + $0x34] sm:$0xf]
    %v229 = vld [vmem:[%s3 + $0x38] sm:$0xf]
    %v230 = vld [vmem:[%s3 + $0x3c] sm:$0xf]
    %v231 = vld [vmem:[%s4] sm:$0x1]
    %v233 = vperm.slane %v231, 0
    %v251 = vunpack.c.l.b16 %v215
    %v252 = vunpack.c.l.b16 %v216
    %v253 = vunpack.c.l.b16 %v217
    %v254 = vunpack.c.l.b16 %v218
    %v255 = vunpack.c.l.b16 %v219
    %v256 = vunpack.c.l.b16 %v220
    %v257 = vunpack.c.l.b16 %v221
    %v258 = vunpack.c.l.b16 %v222
    %v259 = vunpack.c.l.b16 %v223
    %v260 = vunpack.c.l.b16 %v224
    %v261 = vunpack.c.l.b16 %v225
    %v262 = vunpack.c.l.b16 %v226
    %v263 = vunpack.c.l.b16 %v227
    %v264 = vunpack.c.l.b16 %v228
    %v265 = vunpack.c.l.b16 %v229
    %v266 = vunpack.c.l.b16 %v230
    %v267 = vpack.c.b16 %v252, %v251
    %v268 = vpack.c.b16 %v254, %v253
    %v269 = vpack.c.b16 %v256, %v255
    %v270 = vpack.c.b16 %v258, %v257
    %v271 = vpack.c.b16 %v260, %v259
    %v272 = vpack.c.b16 %v262, %v261
    %v273 = vpack.c.b16 %v264, %v263
    %v274 = vpack.c.b16 %v266, %v265
    %283 = vmatpush.bf16.msra.mxu0 %v274
    %284 = vmatpush.bf16.msra.mxu0 %v273
    %285 = vmatpush.bf16.msra.mxu0 %v272
    %286 = vmatpush.bf16.msra.mxu0 %v271
    %287 = vmatpush.bf16.msra.mxu0 %v270
    %288 = vmatpush.bf16.msra.mxu0 %v269
    %289 = vmatpush.bf16.msra.mxu0 %v268
    %290 = vmatpush.bf16.msra.mxu0 %v267
    %291 = vmatmul.bf16.gmra.mxu0 %v207
    %v292 = vpop.f32.mrf.mxu0
    %v293 = vadd.f32 %v233, %v292
    %v294 = vpop.f32.mrf.mxu0
    %v295 = vadd.f32 %v233, %v294
    %296 = vmatmul.bf16.gmra.mxu0 %v208
    %v297 = vpop.f32.mrf.mxu0
    %v298 = vadd.f32 %v233, %v297
    %v299 = vpop.f32.mrf.mxu0
    %v300 = vadd.f32 %v233, %v299
    %301 = vmatmul.bf16.gmra.mxu0 %v209
    %v302 = vpop.f32.mrf.mxu0
    %v303 = vadd.f32 %v233, %v302
    %v304 = vpop.f32.mrf.mxu0
    %v305 = vadd.f32 %v233, %v304
    %306 = vmatmul.bf16.gmra.mxu0 %v210
    %v307 = vpop.f32.mrf.mxu0
    %v308 = vadd.f32 %v233, %v307
    %v309 = vpop.f32.mrf.mxu0
    %v310 = vadd.f32 %v233, %v309
    %311 = vmatmul.bf16.gmra.mxu0 %v211
    %v312 = vpop.f32.mrf.mxu0
    %v313 = vadd.f32 %v233, %v312
    %v314 = vpop.f32.mrf.mxu0
    %v315 = vadd.f32 %v233, %v314
    %316 = vmatmul.bf16.gmra.mxu0 %v212
    %v317 = vpop.f32.mrf.mxu0
    %v318 = vadd.f32 %v233, %v317
    %v319 = vpop.f32.mrf.mxu0
    %v320 = vadd.f32 %v233, %v319
    %321 = vmatmul.bf16.gmra.mxu0 %v213
    %v322 = vpop.f32.mrf.mxu0
    %v323 = vadd.f32 %v233, %v322
    %v324 = vpop.f32.mrf.mxu0
    %v325 = vadd.f32 %v233, %v324
    %326 = vmatmul.bf16.gmra.mxu0 %v214
    %v327 = vpop.f32.mrf.mxu0
    %v328 = vadd.f32 %v233, %v327
    %v329 = vpop.f32.mrf.mxu0
    %v330 = vadd.f32 %v233, %v329
    %331 = vdwg.mxu0
    %s332 = sld [smem:[#allocation2]]
    %vm333 = vcmp.gt.f32.partialorder %v293, 0.0
    %vm334 = vcmp.gt.f32.partialorder %v295, 0.0
    %vm335 = vcmp.gt.f32.partialorder %v298, 0.0
    %vm336 = vcmp.gt.f32.partialorder %v300, 0.0
    %vm337 = vcmp.gt.f32.partialorder %v303, 0.0
    %vm338 = vcmp.gt.f32.partialorder %v305, 0.0
    %vm339 = vcmp.gt.f32.partialorder %v308, 0.0
    %vm340 = vcmp.gt.f32.partialorder %v310, 0.0
    %vm341 = vcmp.gt.f32.partialorder %v313, 0.0
    %vm342 = vcmp.gt.f32.partialorder %v315, 0.0
    %vm343 = vcmp.gt.f32.partialorder %v318, 0.0
    %vm344 = vcmp.gt.f32.partialorder %v320, 0.0
    %vm345 = vcmp.gt.f32.partialorder %v323, 0.0
    %vm346 = vcmp.gt.f32.partialorder %v325, 0.0
    %vm347 = vcmp.gt.f32.partialorder %v328, 0.0
    %vm348 = vcmp.gt.f32.partialorder %v330, 0.0
    %v349 = vstv %s332
    %v350 = vmul.f32 %v349, %v293
    %v351 = vmul.f32 %v349, %v295
    %v352 = vmul.f32 %v349, %v298
    %v353 = vmul.f32 %v349, %v300
    %v354 = vmul.f32 %v349, %v303
    %v355 = vmul.f32 %v349, %v305
    %v356 = vmul.f32 %v349, %v308
    %v357 = vmul.f32 %v349, %v310
    %v358 = vmul.f32 %v349, %v313
    %v359 = vmul.f32 %v349, %v315
    %v360 = vmul.f32 %v349, %v318
    %v361 = vmul.f32 %v349, %v320
    %v362 = vmul.f32 %v349, %v323
    %v363 = vmul.f32 %v349, %v325
    %v364 = vmul.f32 %v349, %v328
    %v365 = vmul.f32 %v349, %v330
    %v366 = vsel %vm333, %v293, %v350
    %v367 = vsel %vm334, %v295, %v351
    %v368 = vsel %vm335, %v298, %v352
    %v369 = vsel %vm336, %v300, %v353
    %v370 = vsel %vm337, %v303, %v354
    %v371 = vsel %vm338, %v305, %v355
    %v372 = vsel %vm339, %v308, %v356
    %v373 = vsel %vm340, %v310, %v357
    %v374 = vsel %vm341, %v313, %v358
    %v375 = vsel %vm342, %v315, %v359
    %v376 = vsel %vm343, %v318, %v360
    %v377 = vsel %vm344, %v320, %v361
    %v378 = vsel %vm345, %v323, %v362
    %v379 = vsel %vm346, %v325, %v363
    %v380 = vsel %vm347, %v328, %v364
    %v381 = vsel %vm348, %v330, %v365
    %v382 = vld [vmem:[%s5] sm:$0x1]
    %s383 = sld [smem:[#allocation2 + $0x1]]
    %v384 = vstv %s383
    %385 = vmatpush.xpose.msra.mxu0 %v381
    %386 = vmatpush.xpose.msra.mxu0 %v380
    %387 = vmatpush.xpose.msra.mxu0 %v379
    %388 = vmatpush.xpose.msra.mxu0 %v378
    %389 = vmatpush.xpose.msra.mxu0 %v377
    %390 = vmatpush.xpose.msra.mxu0 %v376
    %391 = vmatpush.xpose.msra.mxu0 %v375
    %392 = vmatpush.xpose.msra.mxu0 %v374
    %393 = vmatpush.xpose.msra.mxu0 %v373
    %394 = vmatpush.xpose.msra.mxu0 %v372
    %395 = vmatpush.xpose.msra.mxu0 %v371
    %396 = vmatpush.xpose.msra.mxu0 %v370
    %397 = vmatpush.xpose.msra.mxu0 %v369
    %398 = vmatpush.xpose.msra.mxu0 %v368
    %399 = vmatpush.xpose.msra.mxu0 %v367
    %400 = vmatpush.xpose.msra.mxu0 %v366
    %401 = vmatmul.f32.gmra.mxu0 %v382
    %v402 = vpop.f32.mrf.mxu0
    %v403 = vadd.f32 %v384, %v402
    %404 = vdwg.mxu0
    %v405 = vxor.u32 %v403, 2147483648
    %v406 = vmul.f32 %v405, 1.442695
    %v407 = vpow.pop %v406
    %v408 = vadd.f32 %v407, 1.0
    %v409 = vrcp.pop %v408
    %v410 = vmul.f32 %v408, %v409
    %v411 = vsub.f32 1.0, %v410
    %v412 = vmul.f32 %v409, %v411
    %v413 = vadd.f32 %v409, %v412
    %vm414 = vweird.f32 %v408
    %vm415 = vweird.f32 %v409
    %vm416 = vmor %vm414, %vm415
    %v417 = vsel %vm416, %v409, %v413
    %v418 = vand.u32 2147483647, %v408
    %vm419 = vcmp.eq.f32.partialorder %v418, 8.507059e+37
    %v420 = vand.u32 %v408, 2147483648
    %v421 = vor.u32 1.1754944e-38, %v420
    %v422 = vsel %vm419, %v421, %v417
    %v423 = vmul.f32 1.0, %v422
    %424 = vst [vmem:[#allocation5] sm:$0x1] %v423
    // Predicated region
    $region34: #{tpu_custom_call.1} parent=1 // pred_check
      _
    $region35: #{tpu_custom_call.1} parent=1 // pred_check_branch
      %426 = sbr.rel (0) target = $region37
    $region36: #{tpu_custom_call.1} parent=1 // pred_region
      %428 = vsyncadd [#allocation3], 0
      %s430 = sshll.u32 [#allocation5], 4
      %s431 = int_to_ptr.vmem [resolvable:$true] %s430
      %s432 = sshll.u32 %s7, 4
      %s433 = int_to_ptr.hbm [resolvable:$true] %s432
      %435 = dma.vmem_to_hbm [thread:$0]  %s431, 16, %s433, [#allocation3]
    $region37: #{tpu_custom_call.1} parent=1 // pred_fallthru
      _
    // Predicated region
    $region38: #{tpu_custom_call.1} parent=1 // pred_check
      _
    $region39: #{tpu_custom_call.1} parent=1 // pred_check_branch
      %437 = sbr.rel (0) target = $region41
    $region40: #{tpu_custom_call.1} parent=1 // pred_region
      %439 = dma.done [#allocation3], 16
    $region41: #{tpu_custom_call.1} parent=1 // pred_fallthru
      _
    %440 = vsyncpa [#allocation3], 1
    %441 = vsyncpa [#allocation4], 1

</llo_original>
